<compile_context>
chip_gen: v5e
topology: v5e:2x2
jax: 0.10.0
libtpu: 0.0.40
codegen_flags: <defaults>
</compile_context>

<pallas_src>
import functools

import jax
import jax.numpy as jnp
from jax.experimental import pallas as pl
from jax.experimental.pallas import tpu as pltpu


# ----------------------------- kernels -------------------------------------


def _stats_kernel(x_ref, sx_ref, sx2_ref, *, hw_total, thw):
    # x_ref : (N, TC, THW) block; sx/sx2 : (TC, 1) f32 accumulators that stay
    # VMEM-resident across the trailing ("arbitrary") spatial grid axis.
    @pl.when(pl.program_id(1) == 0)
    def _init():
        sx_ref[...] = jnp.zeros_like(sx_ref)
        sx2_ref[...] = jnp.zeros_like(sx2_ref)

    xf = x_ref[...].astype(jnp.float32)
    if hw_total % thw != 0:
        # Tail block: zero out lanes past the true spatial extent (Pallas pads
        # out-of-bounds block reads with unspecified data).
        start = pl.program_id(1) * thw
        lane = start + jax.lax.broadcasted_iota(jnp.int32, xf.shape, 2)
        xf = jnp.where(lane < hw_total, xf, 0.0)
    sx_ref[...] += jnp.sum(xf, axis=(0, 2))[:, None]
    sx2_ref[...] += jnp.sum(xf * xf, axis=(0, 2))[:, None]


def _apply_kernel(x_ref, scale_ref, shift_ref, o_ref):
    # x_ref : (N, TC, THW);  scale/shift : (TC, 1) per-channel affine.
    # Compute dtype follows scale_ref (f32, or native bf16 on v6e/v7x).
    scale = scale_ref[...][None, :, :]          # (1, TC, 1)
    shift = shift_ref[...][None, :, :]
    xv = x_ref[...].astype(scale.dtype)
    o_ref[...] = (xv * scale - shift).astype(o_ref.dtype)


# --------------------------- hardware / tiling helpers -----------------------


def _tpu_vmem_capacity_bytes():
    try:
        info = pltpu.get_tpu_info()
        cap = getattr(info, "vmem_capacity_bytes", None)
        if cap:
            return int(cap)
    except Exception:
        pass
    return 64 << 20  # conservative (v7x-sized) fallback


def _device_kind():
    try:
        return jax.devices()[0].device_kind.lower()
    except Exception:
        return ""


def _apply_compute_dtype(x_dtype):
    # v6e/v7x have a native bf16 VPU; keep f32 math on v5e (and for f32 inputs).
    if x_dtype == jnp.bfloat16 and any(t in _device_kind() for t in ("v6", "v7")):
        return jnp.bfloat16
    return jnp.float32


def _pick_tiles(N, C, HW, itemsize, vmem_cap):
    """Pick (channel_tile, hw_tile): dtype-legal sublanes, lane-dense spatial tiles."""
    big_vmem = vmem_cap >= (100 << 20)              # v5e / v6e: 128 MiB physical
    target = (6 << 20) if big_vmem else (2 << 20)   # per-block byte budget
    min_tc = 8 * max(4 // max(itemsize, 1), 1)      # 8 f32 / 16 bf16 / 32 int8

    # Spatial (lane) tile: multiple of 128; grow while the block fits the budget.
    # Keep exact divisibility when HW is a 128-multiple; otherwise never exceed HW
    # (tail handled by in-kernel mask + dropped OOB stores).
    if HW < 128:
        thw = HW                                    # tiny feature map fallback
    else:
        hw_pad = pl.cdiv(HW, 128) * 128
        max_thw = min(4096 if big_vmem else 2048, hw_pad)
        thw = 128

        def _ok(t):
            if t > max_thw or N * min_tc * t * itemsize > target:
                return False
            return (HW % t == 0) if HW % 128 == 0 else (t <= HW)

        while _ok(thw * 2):
            thw *= 2

    # Channel (sublane) tile: dtype-legal multiple dividing C (else full C).
    if C <= min_tc or C % min_tc != 0:
        tc = C
    else:
        opts = [d for d in range(min_tc, C + 1, min_tc) if C % d == 0]
        fitting = [d for d in opts if N * d * thw * itemsize <= target] or [opts[0]]
        multi = [d for d in fitting if C // d >= 2]  # keep >=2 channel tiles so
        tc = max(multi) if multi else max(fitting)   # both v7x TCs get work
    return tc, thw


def _vmem_limit(block_bytes, vmem_cap):
    cap = (96 << 20) if vmem_cap >= (100 << 20) else (48 << 20)
    return int(min(max(8 * block_bytes + (4 << 20), 16 << 20), cap))


# --------------------------- pallas_call wrappers ----------------------------


def _stats_call(x3, tc, thw, vmem_limit):
    N, C, HW = x3.shape
    grid = (C // tc, pl.cdiv(HW, thw))
    kernel = functools.partial(_stats_kernel, hw_total=HW, thw=thw)
    return pl.pallas_call(
        kernel,
        out_shape=(
            jax.ShapeDtypeStruct((C, 1), jnp.float32),
            jax.ShapeDtypeStruct((C, 1), jnp.float32),
        ),
        grid_spec=pltpu.PrefetchScalarGridSpec(
            num_scalar_prefetch=0,
            grid=grid,
            in_specs=[pl.BlockSpec((N, tc, thw), lambda c, h: (0, c, h))],
            out_specs=[
                pl.BlockSpec((tc, 1), lambda c, h: (c, 0)),
                pl.BlockSpec((tc, 1), lambda c, h: (c, 0)),
            ],
        ),
        compiler_params=pltpu.CompilerParams(
            dimension_semantics=("parallel", "arbitrary"),
            vmem_limit_bytes=vmem_limit,
        ),
        cost_estimate=pl.CostEstimate(
            flops=3 * N * C * HW, transcendentals=0,
            bytes_accessed=x3.size * x3.dtype.itemsize + 2 * C * 4),
    )(x3)


def _apply_call(x3, scale_c, shift_c, tc, thw, vmem_limit, donate_x=False):
    N, C, HW = x3.shape
    grid = (C // tc, pl.cdiv(HW, thw))
    extra = {"input_output_aliases": {0: 0}} if donate_x else {}
    return pl.pallas_call(
        _apply_kernel,
        out_shape=jax.ShapeDtypeStruct((N, C, HW), x3.dtype),
        grid_spec=pltpu.PrefetchScalarGridSpec(
            num_scalar_prefetch=0,
            grid=grid,
            in_specs=[
                pl.BlockSpec((N, tc, thw), lambda c, h: (0, c, h)),
                pl.BlockSpec((tc, 1), lambda c, h: (c, 0)),
                pl.BlockSpec((tc, 1), lambda c, h: (c, 0)),
            ],
            out_specs=pl.BlockSpec((N, tc, thw), lambda c, h: (0, c, h)),
        ),
        compiler_params=pltpu.CompilerParams(
            dimension_semantics=("parallel", "parallel"),
            vmem_limit_bytes=vmem_limit,
        ),
        cost_estimate=pl.CostEstimate(
            flops=2 * N * C * HW, transcendentals=0,
            bytes_accessed=2 * x3.size * x3.dtype.itemsize + 2 * C * 4),
        **extra,
    )(x3, scale_c, shift_c)


# ------------------------------ module forward -------------------------------


def partial_bn_train(x, mask, gain, bias, stored_mean, stored_var,
                     *, eps=1e-5, momentum=0.1,
                     channel_tile=None, hw_tile=None, donate_x=False):
    """Training-mode forward of partial_bn.

    x: (N, C, H, W); mask: (N, 1, H, W) or (N, C, H, W) (original interface —
    no pre-broadcast required); gain/bias: (1, C, 1, 1) or (C,).
    Returns (out, mask, new_stored_mean, new_stored_var).
    """
    N, C, H, W = x.shape
    HW = H * W
    x3 = x.reshape(N, C, HW)

    vmem_cap = _tpu_vmem_capacity_bytes()
    tc, thw = _pick_tiles(N, C, HW, x3.dtype.itemsize, vmem_cap)
    if channel_tile is not None:
        tc = channel_tile
    if hw_tile is not None:
        thw = hw_tile
    assert C % tc == 0
    assert thw % 128 == 0 or thw == HW
    vmem_limit = _vmem_limit(N * tc * thw * max(x3.dtype.itemsize, 4), vmem_cap)

    # Stats pass streams only x (mask count is a tiny separate reduction below).
    sx, sx2 = _stats_call(x3, tc, thw, vmem_limit)

    # cnt: sum of mask over (N, H, W) — (1,1) if mask is (N,1,H,W), (C,1) otherwise.
    cnt = jnp.sum(mask.astype(jnp.float32), axis=(0, 2, 3)).reshape(-1, 1) + eps

    # Per-channel mean / var exactly as partial_manual_bn (f32 stats, cast to x.dtype).
    m = sx / cnt
    m2 = sx2 / cnt
    var = m2 - m * m                                 # no clamp: matches reference
    m = m.astype(x.dtype)
    var = var.astype(x.dtype)

    gain_c = jnp.reshape(gain, (C, 1)).astype(jnp.float32)
    bias_c = jnp.reshape(bias, (C, 1)).astype(jnp.float32)
    scale = jax.lax.rsqrt(var.astype(jnp.float32) + eps) * gain_c    # (C, 1)
    shift = m.astype(jnp.float32) * scale - bias_c                   # (C, 1)

    cdt = _apply_compute_dtype(x.dtype)
    out3 = _apply_call(x3, scale.astype(cdt), shift.astype(cdt),
                       tc, thw, vmem_limit, donate_x)
    out = out3.reshape(N, C, H, W)

    # Running-stat momentum update, returned functionally (JAX is stateless).
    mean_c = m.reshape(C).astype(stored_mean.dtype)
    var_c = var.reshape(C).astype(stored_var.dtype)
    new_mean = stored_mean * (1.0 - momentum) + mean_c * momentum
    new_var = stored_var * (1.0 - momentum) + var_c * momentum

    return out, mask, new_mean, new_var


def partial_bn_eval(x, mask, gain, bias, stored_mean, stored_var, *, eps=1e-5,
                    channel_tile=None, hw_tile=None, donate_x=False):
    """Eval-mode forward (fused_bn with stored stats). Returns (out, mask)."""
    N, C, H, W = x.shape
    HW = H * W
    x3 = x.reshape(N, C, HW)

    vmem_cap = _tpu_vmem_capacity_bytes()
    tc, thw = _pick_tiles(N, C, HW, x3.dtype.itemsize, vmem_cap)
    if channel_tile is not None:
        tc = channel_tile
    if hw_tile is not None:
        thw = hw_tile
    assert C % tc == 0
    assert thw % 128 == 0 or thw == HW
    vmem_limit = _vmem_limit(N * tc * thw * max(x3.dtype.itemsize, 4), vmem_cap)

    gain_c = jnp.reshape(gain, (C, 1)).astype(jnp.float32)
    bias_c = jnp.reshape(bias, (C, 1)).astype(jnp.float32)
    mean_c = jnp.reshape(stored_mean, (C, 1)).astype(jnp.float32)
    var_c = jnp.reshape(stored_var, (C, 1)).astype(jnp.float32)
    scale = jax.lax.rsqrt(var_c + eps) * gain_c
    shift = mean_c * scale - bias_c

    cdt = _apply_compute_dtype(x.dtype)
    out3 = _apply_call(x3, scale.astype(cdt), shift.astype(cdt),
                       tc, thw, vmem_limit, donate_x)
    return out3.reshape(N, C, H, W), mask


# ------------------------------ references ----------------------------------


def _reference_train(x, mask, gain, bias, eps=1e-5):
    xf = x.astype(jnp.float32)
    cnt = jnp.sum(mask.astype(jnp.float32), axis=(0, 2, 3), keepdims=True) + eps
    m = jnp.sum(xf, axis=(0, 2, 3), keepdims=True) / cnt
    m2 = jnp.sum(xf * xf, axis=(0, 2, 3), keepdims=True) / cnt
    var = m2 - m * m
    m = m.astype(x.dtype)
    var = var.astype(x.dtype)
    scale = jax.lax.rsqrt(var + eps) * gain
    shift = m * scale - bias
    return x * scale - shift, m.reshape(-1), var.reshape(-1)


def _reference_eval(x, gain, bias, stored_mean, stored_var, eps=1e-5):
    mean = stored_mean.reshape(1, -1, 1, 1)
    var = stored_var.reshape(1, -1, 1, 1)
    scale = jax.lax.rsqrt(var + eps) * gain
    shift = mean * scale - bias
    return x * scale - shift


if __name__ == "__main__":
    key = jax.random.PRNGKey(0)

    def run_case(B, C, H, W, k, hw_tile=None):
        kx, km, kg, kb = jax.random.split(k, 4)
        x = jax.random.normal(kx, (B, C, H, W), dtype=jnp.float32)
        mask = (jax.random.uniform(km, (B, 1, H, W)) > 0.3).astype(jnp.float32)
        gain = 1.0 + 0.1 * jax.random.normal(kg, (1, C, 1, 1), dtype=jnp.float32)
        bias = 0.1 * jax.random.normal(kb, (1, C, 1, 1), dtype=jnp.float32)
        stored_mean = jnp.zeros((C,), jnp.float32)
        stored_var = jnp.ones((C,), jnp.float32)
        eps, momentum = 1e-5, 0.1

        out, mask_out, new_mean, new_var = partial_bn_train(
            x, mask, gain, bias, stored_mean, stored_var,
            eps=eps, momentum=momentum, hw_tile=hw_tile)
        out = jax.block_until_ready(out)

        ref_out, ref_m, ref_v = _reference_train(x, mask, gain, bias, eps)
        assert out.shape == x.shape
        assert jnp.allclose(out, ref_out, atol=1e-4, rtol=1e-4)
        assert jnp.allclose(new_mean,
                            stored_mean * (1 - momentum) + ref_m * momentum,
                            atol=1e-5, rtol=1e-5)
        assert jnp.allclose(new_var,
                            stored_var * (1 - momentum) + ref_v * momentum,
                            atol=1e-5, rtol=1e-5)

        out_eval, _ = partial_bn_eval(x, mask, gain, bias, new_mean, new_var,
                                      eps=eps, hw_tile=hw_tile)
        out_eval = jax.block_until_ready(out_eval)
        ref_eval = _reference_eval(x, gain, bias, new_mean, new_var, eps)
        assert jnp.allclose(out_eval, ref_eval, atol=1e-4, rtol=1e-4)

    k1, k2 = jax.random.split(key)
    # 128-multiple spatial extent; force hw_tile=128 so the stats grid is (2, 2)
    # (channel tiling + multi-step resident-accumulator reduction).
    run_case(2, 16, 16, 16, k1, hw_tile=128)
    # Non-128-multiple spatial extent (HW=196): exercises the cdiv tail-block
    # path (iota-masked stats, dropped OOB stores in apply).
    run_case(2, 8, 14, 14, k2)

    print("KERNEL_OK")
</pallas_src>

<mosaic_0001>
module attributes {stable_mosaic.version = 11 : i64} {
  func.func @_stats_kernel(%arg0: i32, %arg1: i32, %arg2: memref<2x8x128xf32, #tpu.memory_space<vmem>>, %arg3: memref<8x1xf32, #tpu.memory_space<vmem>>, %arg4: memref<8x1xf32, #tpu.memory_space<vmem>>) attributes {dimension_semantics = [#tpu.dimension_semantics<parallel>, #tpu.dimension_semantics<arbitrary>], iteration_bounds = array<i64: 2, 2>, scalar_prefetch = 0 : i64, scratch_operands = 0 : i64, tpu.core_type = #tpu.core_type<tc>, window_params = [{transform_indices = @transform_0, window_bounds = array<i64: 2, 8, 128>}, {transform_indices = @transform_1, window_bounds = array<i64: 8, 1>}, {transform_indices = @transform_2, window_bounds = array<i64: 8, 1>}]} {
    %c0_i32 = arith.constant 0 : i32
    %0 = arith.cmpi eq, %arg1, %c0_i32 : i32
    %1 = arith.extui %0 : i1 to i32
    %c0_i32_0 = arith.constant 0 : i32
    %2 = arith.cmpi ne, %1, %c0_i32_0 : i32
    scf.if %2 {
      %cst_12 = arith.constant 0.000000e+00 : f32
      %15 = vector.broadcast %cst_12 : f32 to vector<8x1xf32>
      %c0_13 = arith.constant 0 : index
      %c0_14 = arith.constant 0 : index
      %16 = vector.load %arg3[%c0_13, %c0_14] : memref<8x1xf32, #tpu.memory_space<vmem>>, vector<8x1xf32>
      tpu.vector_store %arg3[%c0_13, %c0_14], %15 {strides = array<i32>} : memref<8x1xf32, #tpu.memory_space<vmem>>, vector<8x1xf32>,
      %cst_15 = arith.constant 0.000000e+00 : f32
      %17 = vector.broadcast %cst_15 : f32 to vector<8x1xf32>
      %c0_16 = arith.constant 0 : index
      %c0_17 = arith.constant 0 : index
      %18 = vector.load %arg4[%c0_16, %c0_17] : memref<8x1xf32, #tpu.memory_space<vmem>>, vector<8x1xf32>
      tpu.vector_store %arg4[%c0_16, %c0_17], %17 {strides = array<i32>} : memref<8x1xf32, #tpu.memory_space<vmem>>, vector<8x1xf32>,
    } else {
    }
    %c0 = arith.constant 0 : index
    %c0_1 = arith.constant 0 : index
    %c0_2 = arith.constant 0 : index
    %3 = vector.load %arg2[%c0, %c0_1, %c0_2] : memref<2x8x128xf32, #tpu.memory_space<vmem>>, vector<2x8x128xf32>
    %c0_3 = arith.constant 0 : index
    %c0_4 = arith.constant 0 : index
    %4 = vector.load %arg3[%c0_3, %c0_4] : memref<8x1xf32, #tpu.memory_space<vmem>>, vector<8x1xf32>
    %cst = arith.constant dense<0.000000e+00> : vector<8xf32>
    %5 = vector.multi_reduction <add>, %3, %cst [0, 2] : vector<2x8x128xf32> to vector<8xf32>
    %6 = vector.shape_cast %5 : vector<8xf32> to vector<8x1xf32>
    %7 = arith.addf %4, %6 : vector<8x1xf32>
    %c0_5 = arith.constant 0 : index
    %c0_6 = arith.constant 0 : index
    %8 = vector.load %arg3[%c0_5, %c0_6] : memref<8x1xf32, #tpu.memory_space<vmem>>, vector<8x1xf32>
    tpu.vector_store %arg3[%c0_5, %c0_6], %7 {strides = array<i32>} : memref<8x1xf32, #tpu.memory_space<vmem>>, vector<8x1xf32>,
    %c0_7 = arith.constant 0 : index
    %c0_8 = arith.constant 0 : index
    %9 = vector.load %arg4[%c0_7, %c0_8] : memref<8x1xf32, #tpu.memory_space<vmem>>, vector<8x1xf32>
    %10 = arith.mulf %3, %3 : vector<2x8x128xf32>
    %cst_9 = arith.constant dense<0.000000e+00> : vector<8xf32>
    %11 = vector.multi_reduction <add>, %10, %cst_9 [0, 2] : vector<2x8x128xf32> to vector<8xf32>
    %12 = vector.shape_cast %11 : vector<8xf32> to vector<8x1xf32>
    %13 = arith.addf %9, %12 : vector<8x1xf32>
    %c0_10 = arith.constant 0 : index
    %c0_11 = arith.constant 0 : index
    %14 = vector.load %arg4[%c0_10, %c0_11] : memref<8x1xf32, #tpu.memory_space<vmem>>, vector<8x1xf32>
    tpu.vector_store %arg4[%c0_10, %c0_11], %13 {strides = array<i32>} : memref<8x1xf32, #tpu.memory_space<vmem>>, vector<8x1xf32>,
    return
  }
  func.func @transform_0(%arg0: i32, %arg1: i32) -> (i32, i32, i32) {
    %c0_i32 = arith.constant 0 : i32
    %c0_i32_0 = arith.constant 0 : i32
    return %c0_i32, %arg0, %arg1 : i32, i32, i32
  }
  func.func @transform_1(%arg0: i32, %arg1: i32) -> (i32, i32) {
    %c0_i32 = arith.constant 0 : i32
    %c0_i32_0 = arith.constant 0 : i32
    return %arg0, %c0_i32 : i32, i32
  }
  func.func @transform_2(%arg0: i32, %arg1: i32) -> (i32, i32) {
    %c0_i32 = arith.constant 0 : i32
    %c0_i32_0 = arith.constant 0 : i32
    return %arg0, %c0_i32 : i32, i32
  }
}

</mosaic_0001>

<llo_original>
// kernel: tpu_custom_call.1
$region0: #{tpu_custom_call.1}
  #allocation0 [shape = 'u32[]', space=smem, size = 0x4, offset = 0x4, fixed_abs, tag = 'smem constant byte address 0x4 - core index']
  #allocation1 [shape = 'u32[72,128]{1,0:T(1,128)}', space=vmem, size = 0x9000, scoped, tag = 'internal scratch']
  %s0 = inlined_call_operand.hbm [shape: f32[2,16,256], index: 0, kind: input, shape index: {}]
  %s1 = inlined_call_operand.vmem [shape: f32[16,1], index: 1, kind: output, shape index: {0}]
  %s2 = inlined_call_operand.vmem [shape: f32[16,1], index: 2, kind: output, shape index: {1}]
  %3 = xla_tuple %s1, %s2
  %s4 = sld [smem:[#allocation0]]
  $region53: #{tpu_custom_call.1} parent=0
    _
  %s6 = ssub.s32 1, %s4
  %s7 = scalar_select 0, %s6, %s4
  $region1: #{tpu_custom_call.1} parent=0
    #allocation2 [shape = 'u8[16384]{0}', space=vmem, size = 0x4000, scoped, tag = 'input window, operand 0']
    #allocation3 [shape = 's32[2]{0}', space=sflag, size = 0x8, scoped, tag = 'scoped memory for tpu_custom_call.1']
    %8 = vsyncpa [#allocation3], 0
    %s9 = scalar_lea.sflag [#allocation3], 1
    %10 = vsyncpa %s9, 0
    loop: start=0, step=1, limit=6
    $region2: #{tpu_custom_call.1} parent=1 // loop_pre_header
      _
    $region3: #{tpu_custom_call.1} parent=1 // loop_header
      %s12 = sphi 0, %s16
      %p13 = scmp.ge.s32.totalorder %s12, 6
      %s19 = sphi 0, %s31
      %s20 = sphi 0, %s27
      %s21 = sphi 0, %s19
      %s22 = sphi 0, %s20
      %s23 = sphi 0, %s21
      %s24 = sphi 0, %s22
      %s36 = sphi 0, %s38
      %s39 = sphi 0, %s36
      %s40 = sphi 0, %s39
      %s56 = sphi 0, %s40
      %s62 = sphi 0, %s64
      %s65 = sphi 0, %s62
      %s66 = sphi 0, %s65
      %s82 = sphi 0, %s66
      %s88 = sphi 0, %s90
      %s91 = sphi 0, %s88
      %s92 = sphi 0, %s91
      %s108 = sphi 0, %s92
    $region4: #{tpu_custom_call.1} parent=1 // loop_header_branch
      %15 = sbr.rel (%p13) target = $region8
    $region5: #{tpu_custom_call.1} parent=1 // loop_body
      %s17 = ssub.s32 %s12, 1
      %s18 = ssub.s32 %s12, 2
      %s25 = sadd.s32 1, %s20
      %p26 = scmp.ge.s32.totalorder %s25, 2
      %s27 = scalar_select %p26, 0, %s25
      %s28 = sadd.s32 1, %s19
      %s29 = scalar_select %p26, %s28, %s19
      %p30 = scmp.ge.s32.totalorder %s29, 2
      %s31 = scalar_select %p30, 0, %s29
      %s32 = ssub.s32 %s19, %s31
      %s33 = ssub.s32 %s20, %s27
      %s34 = sor.u32 %s32, %s33
      %p35 = scmp.eq.s32.totalorder %s34, 0
      %s37 = sadd.s32 %s36, 1
      %s38 = scalar_select %p35, %s36, %s37
      %p41 = pneg %p35
      %p42 = scmp.eq.s32.totalorder %s12, 3
      %p43 = por %p41, %p42
      %p44 = scmp.ne.s32.totalorder %s36, %s39
      %p45 = scmp.eq.s32.totalorder %s12, 0
      %p46 = por %p44, %p45
      %p47 = scmp.ne.s32.totalorder %s36, %s39
      %p48 = scmp.eq.s32.totalorder %s17, 3
      %p49 = por %p47, %p48
      %p50 = scmp.ne.s32.totalorder %s39, %s40
      %p51 = scmp.eq.s32.totalorder %s17, 0
      %p52 = por %p50, %p51
      %p53 = scmp.ne.s32.totalorder %s39, %s40
      %p54 = scmp.eq.s32.totalorder %s18, 3
      %p55 = por %p53, %p54
      %p57 = scmp.ne.s32.totalorder %s40, %s56
      %p58 = scmp.eq.s32.totalorder %s18, 0
      %p59 = por %p57, %p58
      %s60 = ssub.s32 %s19, %s31
      %p61 = scmp.eq.s32.totalorder %s60, 0
      %s63 = sadd.s32 %s62, 1
      %s64 = scalar_select %p61, %s62, %s63
      %p67 = pneg %p61
      %p68 = scmp.eq.s32.totalorder %s12, 3
      %p69 = por %p67, %p68
      %p70 = scmp.ne.s32.totalorder %s62, %s65
      %p71 = scmp.eq.s32.totalorder %s12, 0
      %p72 = por %p70, %p71
      %p73 = scmp.ne.s32.totalorder %s62, %s65
      %p74 = scmp.eq.s32.totalorder %s17, 3
      %p75 = por %p73, %p74
      %p76 = scmp.ne.s32.totalorder %s65, %s66
      %p77 = scmp.eq.s32.totalorder %s17, 0
      %p78 = por %p76, %p77
      %p79 = scmp.ne.s32.totalorder %s65, %s66
      %p80 = scmp.eq.s32.totalorder %s18, 3
      %p81 = por %p79, %p80
      %p83 = scmp.ne.s32.totalorder %s66, %s82
      %p84 = scmp.eq.s32.totalorder %s18, 0
      %p85 = por %p83, %p84
      %s86 = ssub.s32 %s19, %s31
      %p87 = scmp.eq.s32.totalorder %s86, 0
      %s89 = sadd.s32 %s88, 1
      %s90 = scalar_select %p87, %s88, %s89
      %p93 = pneg %p87
      %p94 = scmp.eq.s32.totalorder %s12, 3
      %p95 = por %p93, %p94
      %p96 = scmp.ne.s32.totalorder %s88, %s91
      %p97 = scmp.eq.s32.totalorder %s12, 0
      %p98 = por %p96, %p97
      %p99 = scmp.ne.s32.totalorder %s88, %s91
      %p100 = scmp.eq.s32.totalorder %s17, 3
      %p101 = por %p99, %p100
      %p102 = scmp.ne.s32.totalorder %s91, %s92
      %p103 = scmp.eq.s32.totalorder %s17, 0
      %p104 = por %p102, %p103
      %p105 = scmp.ne.s32.totalorder %s91, %s92
      %p106 = scmp.eq.s32.totalorder %s18, 3
      %p107 = por %p105, %p106
      %p109 = scmp.ne.s32.totalorder %s92, %s108
      %p110 = scmp.eq.s32.totalorder %s18, 0
      %p111 = por %p109, %p110
      %p112 = scmp.le.s32.totalorder 1, %s12
      %p113 = scmp.lt.s32.totalorder %s12, 5
      %p114 = pnand %p112, %p113
      %p115 = pneg %p114
      // Predicated region
      $region9: #{tpu_custom_call.1} parent=5 // pred_check
        _
      $region10: #{tpu_custom_call.1} parent=5 // pred_check_branch
        %117 = sbr.rel (%p114) target = $region12
      $region11: #{tpu_custom_call.1} parent=5 // pred_region
        %s118 = ssub.s32 %s12, 1
      $region12: #{tpu_custom_call.1} parent=5 // pred_fallthru
        _
      %p119 = scmp.lt.s32.totalorder %s12, 4
      // Predicated region
      $region13: #{tpu_custom_call.1} parent=5 // pred_check
        %p120 = pneg %p119
      $region14: #{tpu_custom_call.1} parent=5 // pred_check_branch
        %122 = sbr.rel (%p120) target = $region16
      $region15: #{tpu_custom_call.1} parent=5 // pred_region
        // Predicated region
        $region17: #{tpu_custom_call.1} parent=15 // pred_check
          %p123 = pneg %p46
        $region18: #{tpu_custom_call.1} parent=15 // pred_check_branch
          %125 = sbr.rel (%p123) target = $region20
        $region19: #{tpu_custom_call.1} parent=15 // pred_region
          %s126 = sand.u32 %s36, 1
          %s127 = scalar_lea.sflag [#allocation3], %s126
          %s128 = sand.u32 %s36, 1
          %s129 = smul.addr %s128, 16
          %s130 = scalar_lea.vmem [#allocation2], %s129
          %132 = vsyncadd %s127, 0
          %s133 = smul.addr %s19, 2
          %s134 = sadd.s32 %s20, %s133
          %s135 = smul.addr %s134, 8
          %s136 = scalar_lea.hbm %s0, %s135
          %s137 = sshll.u32 %s136, 4
          %s138 = int_to_ptr.hbm [resolvable:$true] %s137
          %s139 = sshll.u32 %s130, 4
          %s140 = int_to_ptr.vmem [resolvable:$true] %s139
          %145 = dma.hbm_to_vmem [thread:$0]  %s138, 256, %s140, %s127, 512, 128, 8
        $region20: #{tpu_custom_call.1} parent=15 // pred_fallthru
          _
      $region16: #{tpu_custom_call.1} parent=5 // pred_fallthru
        _
      %p146 = scmp.le.s32.totalorder 1, %s12
      %p147 = scmp.lt.s32.totalorder %s12, 5
      %p148 = pnand %p146, %p147
      %p149 = pneg %p148
      // Predicated region
      $region21: #{tpu_custom_call.1} parent=5 // pred_check
        _
      $region22: #{tpu_custom_call.1} parent=5 // pred_check_branch
        %151 = sbr.rel (%p148) target = $region24
      $region23: #{tpu_custom_call.1} parent=5 // pred_region
        %s152 = ssub.s32 %s12, 1
        %s153 = sand.u32 %s39, 1
        %s154 = scalar_lea.sflag [#allocation3], %s153
        %s155 = sand.u32 %s39, 1
        %s156 = smul.addr %s155, 16
        %s157 = scalar_lea.vmem [#allocation2], %s156
        // Predicated region
        $region25: #{tpu_custom_call.1} parent=23 // pred_check
          %p158 = pneg %p52
        $region26: #{tpu_custom_call.1} parent=23 // pred_check_branch
          %160 = sbr.rel (%p158) target = $region28
        $region27: #{tpu_custom_call.1} parent=23 // pred_region
          %162 = dma.done %s154, 256
        $region28: #{tpu_custom_call.1} parent=23 // pred_fallthru
          _
        %s163 = sand.u32 %s39, 1
        %s164 = scalar_lea.sflag [#allocation3], %s163
        %s165 = sand.u32 %s39, 1
        %s166 = smul.addr %s165, 16
        %s167 = scalar_lea.vmem [#allocation2], %s166
        %p168 = pneg %p52
        %p169 = pneg %p49
        %p170 = pneg %p78
        %p171 = pneg %p75
        %p172 = scmp.lt.s32.totalorder %s21, 1
        %s173 = scalar_select %p172, %s21, 1
        %s174 = smul.addr %s173, 8
        %s175 = scalar_lea.vmem %s1, %s174
        %p176 = pneg %p104
        %p177 = pneg %p101
        %p178 = scmp.lt.s32.totalorder %s21, 1
        %s179 = scalar_select %p178, %s21, 1
        %s180 = smul.addr %s179, 8
        %s181 = scalar_lea.vmem %s2, %s180
        %p182 = scmp.lt.s32.totalorder %s21, 1
        %s183 = scalar_select %p182, %s21, 1
        %s184 = smul.addr %s183, 8
        %s185 = scalar_lea.vmem %s1, %s184
        %p186 = scmp.lt.s32.totalorder %s21, 1
        %s187 = scalar_select %p186, %s21, 1
        %s188 = smul.addr %s187, 8
        %s189 = scalar_lea.vmem %s2, %s188
        %p190 = scmp.eq.s32.totalorder %s22, 0
        // Predicated region
        $region29: #{tpu_custom_call.1} parent=23 // pred_check
          %p191 = pneg %p190
        $region30: #{tpu_custom_call.1} parent=23 // pred_check_branch
          %193 = sbr.rel (%p191) target = $region32
        $region31: #{tpu_custom_call.1} parent=23 // pred_region
          %vm194 = vcmask 7168
          %195 = vst.msk [vmem:[%s185] sm:$0xff] %vm194, 0.0
          %196 = vst.msk [vmem:[%s189] sm:$0xff] %vm194, 0.0
        $region32: #{tpu_custom_call.1} parent=23 // pred_fallthru
          _
        %v197 = vld [vmem:[%s157] sm:$0xff]
        %v198 = vld [vmem:[%s157 + $0x8] sm:$0xff]
        %v199 = vld [vmem:[%s185] sm:$0xff]
        %v200 = vadd.f32 %v197, %v198
        %201 = vadd.xlane.f32.xlu0 %v200
        %v202 = vpop.xlane.xlu0 %201
        %v203 = vadd.f32 %v199, %v202
        %vm204 = vcmask 7168
        %205 = vst.msk [vmem:[%s185] sm:$0xff] %vm204, %v203
        %v206 = vld [vmem:[%s189] sm:$0xff]
        %v207 = vmul.f32 %v197, %v197
        %v208 = vmul.f32 %v198, %v198
        %v209 = vadd.f32 %v207, %v208
        %210 = vadd.xlane.f32.xlu0 %v209
        %v211 = vpop.xlane.xlu0 %210
        %v212 = vadd.f32 %v206, %v211
        %213 = vst.msk [vmem:[%s189] sm:$0xff] %vm204, %v212
        %p214 = scmp.lt.s32.totalorder %s21, 1
        %s215 = scalar_select %p214, %s21, 1
        %s216 = smul.addr %s215, 8
        %s217 = scalar_lea.vmem %s1, %s216
        %p218 = scmp.lt.s32.totalorder %s21, 1
        %s219 = scalar_select %p218, %s21, 1
        %s220 = smul.addr %s219, 8
        %s221 = scalar_lea.vmem %s2, %s220
        // Predicated region
        $region33: #{tpu_custom_call.1} parent=23 // pred_check
          %p222 = pneg %p75
        $region34: #{tpu_custom_call.1} parent=23 // pred_check_branch
          %224 = sbr.rel (%p222) target = $region36
        $region35: #{tpu_custom_call.1} parent=23 // pred_region
          _
        $region36: #{tpu_custom_call.1} parent=23 // pred_fallthru
          _
        // Predicated region
        $region37: #{tpu_custom_call.1} parent=23 // pred_check
          %p225 = pneg %p101
        $region38: #{tpu_custom_call.1} parent=23 // pred_check_branch
          %227 = sbr.rel (%p225) target = $region40
        $region39: #{tpu_custom_call.1} parent=23 // pred_region
          _
        $region40: #{tpu_custom_call.1} parent=23 // pred_fallthru
          _
      $region24: #{tpu_custom_call.1} parent=5 // pred_fallthru
        _
      %p228 = scmp.le.s32.totalorder 2, %s12
      // Predicated region
      $region41: #{tpu_custom_call.1} parent=5 // pred_check
        %p229 = pneg %p228
      $region42: #{tpu_custom_call.1} parent=5 // pred_check_branch
        %231 = sbr.rel (%p229) target = $region44
      $region43: #{tpu_custom_call.1} parent=5 // pred_region
        %s232 = ssub.s32 %s12, 2
        // Predicated region
        $region45: #{tpu_custom_call.1} parent=43 // pred_check
          %p233 = pneg %p81
        $region46: #{tpu_custom_call.1} parent=43 // pred_check_branch
          %235 = sbr.rel (%p233) target = $region48
        $region47: #{tpu_custom_call.1} parent=43 // pred_region
          %p236 = scmp.lt.s32.totalorder %s23, 1
          %s237 = scalar_select %p236, %s23, 1
          %s238 = smul.addr %s237, 8
          %s239 = scalar_lea.vmem %s1, %s238
        $region48: #{tpu_custom_call.1} parent=43 // pred_fallthru
          _
        // Predicated region
        $region49: #{tpu_custom_call.1} parent=43 // pred_check
          %p240 = pneg %p107
        $region50: #{tpu_custom_call.1} parent=43 // pred_check_branch
          %242 = sbr.rel (%p240) target = $region52
        $region51: #{tpu_custom_call.1} parent=43 // pred_region
          %p243 = scmp.lt.s32.totalorder %s23, 1
          %s244 = scalar_select %p243, %s23, 1
          %s245 = smul.addr %s244, 8
          %s246 = scalar_lea.vmem %s2, %s245
        $region52: #{tpu_custom_call.1} parent=43 // pred_fallthru
          _
      $region44: #{tpu_custom_call.1} parent=5 // pred_fallthru
        _
    $region6: #{tpu_custom_call.1} parent=1 // loop_footer
      %s16 = sadd.s32 1, %s12
    $region7: #{tpu_custom_call.1} parent=1 // loop_footer_branch
      %11 = sbr.rel target = $region3
    $region8: #{tpu_custom_call.1} parent=1 // loop_exit
      _
    %247 = vsyncpa [#allocation3], 1
    %s248 = scalar_lea.sflag [#allocation3], 1
    %249 = vsyncpa %s248, 1

</llo_original>
